<compile_context>
chip_gen: v7x
topology: tpu7x:2x2x1
jax: 0.10.0
libtpu: 0.0.40
codegen_flags: <defaults>
</compile_context>

<pallas_src>
import jax
import jax.numpy as jnp
from jax.experimental import pallas as pl
from jax.experimental.pallas import tpu as pltpu

_VMEM_BUDGET = 48 * 1024 * 1024   # working-set budget (conservative for v7x's 64 MiB)
_VMEM_CAP = 56 * 1024 * 1024      # scoped VMEM limit handed to Mosaic


def _round_up(x, m):
    return (x + m - 1) // m * m


def prepare_saint_self_output_params(weight, bias):
    """One-time parameter prep (do at load time, NOT per call).

    nn.Linear stores weight as (out, in); the kernel wants (in, out) bf16 so
    the matmul is a standard contraction with no in-kernel transpose.
    """
    return weight.T.astype(jnp.bfloat16), bias.reshape(1, -1)


def _self_output_kernel(x_ref, w_ref, b_ref, res_ref, o_ref):
    # x_ref:   (TM, H)  activation rows, full contraction dim
    # w_ref:   (H, TN)  bf16 weight slab in (in, out) layout
    # b_ref:   (1, TN)  bias slab
    # res_ref: (TM, TN) residual tile
    # o_ref:   (TM, TN) output tile (HBM buffer aliased with the residual)
    x = x_ref[...].astype(jnp.bfloat16)            # in-kernel cast: no extra HBM pass
    y = jnp.dot(x, w_ref[...], preferred_element_type=jnp.float32)
    y = y + b_ref[...].astype(jnp.float32) + res_ref[...].astype(jnp.float32)
    o_ref[...] = y.astype(o_ref.dtype)


def saint_self_output(hidden_states, input_tensor, weight_io, bias_row, *,
                      tile_m=512, tile_n=None, alias_residual=True):
    """hidden_states / input_tensor: [B, S, H]; weight_io: [H_in, H_out] bf16
    (from prepare_saint_self_output_params); bias_row: [1, H]."""
    B, S, H = hidden_states.shape
    M = B * S
    x2d = hidden_states.reshape(M, H)      # contiguous reshape: no data movement
    r2d = input_tensor.reshape(M, H)
    out_dtype = r2d.dtype                  # output precision follows the residual

    x_b = x2d.dtype.itemsize
    w_b = weight_io.dtype.itemsize
    r_b = r2d.dtype.itemsize
    o_b = jnp.dtype(out_dtype).itemsize

    # --- tile selection ------------------------------------------------------
    tn = H if tile_n is None else tile_n
    assert H % tn == 0 and (tn == H or tn % 128 == 0), \
        "tile_n must divide H and be lane-aligned"
    tm = max(8, _round_up(min(tile_m, M), 8))

    def vmem_need(tm_, tn_):
        # Double-buffered per-step working set.
        return (2 * tm_ * H * x_b          # x rows (full K)
                + 2 * H * tn_ * w_b        # weight slab
                + 2 * tn_ * 4              # bias
                + 2 * tm_ * tn_ * r_b      # residual tile
                + 2 * tm_ * tn_ * o_b)     # output tile

    if tile_n is None:
        # Shrink the output-column tile first (keeps row tiles big, bounds the
        # resident weight slab on 64 MiB-VMEM parts). Only 128-multiples that
        # divide H are legal without padding.
        while vmem_need(tm, tn) > _VMEM_BUDGET and tn % 256 == 0:
            tn //= 2
    while vmem_need(tm, tn) > _VMEM_BUDGET and tm > 8:
        tm = max(8, _round_up(tm // 2, 8))

    # Megacore / 2-TC chips: make sure the (effectively 1-D) grid has >= 2 row blocks.
    if pl.cdiv(M, tm) < 2 and M > 8:
        tm = max(8, _round_up(pl.cdiv(M, 2), 8))

    grid = (pl.cdiv(M, tm), H // tn)
    vmem_limit = int(min(max(vmem_need(tm, tn) * 5 // 4, 32 * 1024 * 1024), _VMEM_CAP))

    extra = {}
    if alias_residual and r2d.dtype == out_dtype:
        extra["input_output_aliases"] = {3: 0}     # residual input -> output buffer

    out2d = pl.pallas_call(
        _self_output_kernel,
        out_shape=jax.ShapeDtypeStruct((M, H), out_dtype),
        grid_spec=pltpu.PrefetchScalarGridSpec(
            num_scalar_prefetch=0,
            grid=grid,
            in_specs=[
                pl.BlockSpec((tm, H), lambda i, j: (i, 0)),    # x rows, full K
                pl.BlockSpec((H, tn), lambda i, j: (0, j)),    # weight (in, out) slab
                pl.BlockSpec((1, tn), lambda i, j: (0, j)),    # bias slab
                pl.BlockSpec((tm, tn), lambda i, j: (i, j)),   # residual tile
            ],
            out_specs=pl.BlockSpec((tm, tn), lambda i, j: (i, j)),
        ),
        compiler_params=pltpu.CompilerParams(
            dimension_semantics=("parallel", "parallel"),
            vmem_limit_bytes=vmem_limit,
        ),
        **extra,
    )(x2d, weight_io, bias_row, r2d)

    return out2d.reshape(B, S, H)


def _reference(hidden_states, input_tensor, weight, bias):
    # PyTorch nn.Linear semantics: y = x @ W^T + b; eval-mode dropout = identity.
    y = jnp.einsum("bsh,oh->bso", hidden_states, weight)
    return y + bias + input_tensor


def _check(B, S, H, key, **kw):
    k_x, k_r, k_w, k_b = jax.random.split(key, 4)
    hidden_states = jax.random.normal(k_x, (B, S, H), dtype=jnp.float32)
    input_tensor = jax.random.normal(k_r, (B, S, H), dtype=jnp.float32)
    bound = 1.0 / float(H) ** 0.5
    weight = jax.random.uniform(k_w, (H, H), minval=-bound, maxval=bound,
                                dtype=jnp.float32)   # nn.Linear (out, in) layout
    bias = jax.random.uniform(k_b, (H,), minval=-bound, maxval=bound,
                              dtype=jnp.float32)

    ref = _reference(hidden_states, input_tensor, weight, bias)

    # One-time parameter prep (transpose + bf16 cast), amortized over all calls.
    w_io, b_row = prepare_saint_self_output_params(weight, bias)
    out = saint_self_output(hidden_states, input_tensor, w_io, b_row, **kw)
    out = jax.block_until_ready(out)

    assert out.shape == (B, S, H)
    # bf16 MXU operands with f32 accumulation -> loose tolerance vs f32 reference.
    err = float(jnp.max(jnp.abs(out - ref)))
    assert jnp.allclose(out, ref, atol=2e-2, rtol=2e-2), err


if __name__ == "__main__":
    key = jax.random.PRNGKey(0)
    k0, k1, k2 = jax.random.split(key, 3)

    # Small shape consistent with the module (batch=2, seq=8, hidden=32):
    # full-dim (unaligned-H) blocks, 2 row tiles for the megacore axis.
    _check(2, 8, 32, k0)
    # Lane-dense path (H % 128 == 0), tile_m auto-halved 512 -> 256 for 2 row blocks.
    _check(4, 128, 128, k1)
    # Ragged last row tile: M = 120 with tm = 64 (no M padding in the wrapper).
    _check(3, 40, 128, k2)

    print("KERNEL_OK")
</pallas_src>

<mosaic_0001>
module attributes {stable_mosaic.version = 11 : i64} {
  func.func @_self_output_kernel(%arg0: i32, %arg1: i32, %arg2: memref<8x32xf32, #tpu.memory_space<vmem>>, %arg3: memref<32x32xbf16, #tpu.memory_space<vmem>>, %arg4: memref<1x32xf32, #tpu.memory_space<vmem>>, %arg5: memref<8x32xf32, #tpu.memory_space<vmem>>, %arg6: memref<8x32xf32, #tpu.memory_space<vmem>>) attributes {dimension_semantics = [#tpu.dimension_semantics<parallel>, #tpu.dimension_semantics<parallel>], iteration_bounds = array<i64: 2, 1>, scalar_prefetch = 0 : i64, scratch_operands = 0 : i64, tpu.core_type = #tpu.core_type<tc>, window_params = [{transform_indices = @transform_0, window_bounds = array<i64: 8, 32>}, {transform_indices = @transform_1, window_bounds = array<i64: 32, 32>}, {transform_indices = @transform_2, window_bounds = array<i64: 1, 32>}, {transform_indices = @transform_3, window_bounds = array<i64: 8, 32>}, {transform_indices = @transform_4, window_bounds = array<i64: 8, 32>}]} {
    %c0 = arith.constant 0 : index
    %c0_0 = arith.constant 0 : index
    %0 = vector.load %arg2[%c0, %c0_0] : memref<8x32xf32, #tpu.memory_space<vmem>>, vector<8x32xf32>
    %1 = arith.truncf %0 : vector<8x32xf32> to vector<8x32xbf16>
    %c0_1 = arith.constant 0 : index
    %c0_2 = arith.constant 0 : index
    %2 = vector.load %arg3[%c0_1, %c0_2] : memref<32x32xbf16, #tpu.memory_space<vmem>>, vector<32x32xbf16>
    %cst = arith.constant dense<0.000000e+00> : vector<8x32xf32>
    %3 = tpu.matmul %1, %2, %cst {dimension_numbers = #tpu.dot_dimension_numbers<[1], [0], [0], [1], [0, 0, 1, 1], [], []>} : vector<8x32xbf16>, vector<32x32xbf16>, vector<8x32xf32> -> vector<8x32xf32>
    %c0_3 = arith.constant 0 : index
    %c0_4 = arith.constant 0 : index
    %4 = vector.load %arg4[%c0_3, %c0_4] : memref<1x32xf32, #tpu.memory_space<vmem>>, vector<1x32xf32>
    %5 = vector.broadcast %4 : vector<1x32xf32> to vector<8x32xf32>
    %6 = arith.addf %3, %5 : vector<8x32xf32>
    %c0_5 = arith.constant 0 : index
    %c0_6 = arith.constant 0 : index
    %7 = vector.load %arg5[%c0_5, %c0_6] : memref<8x32xf32, #tpu.memory_space<vmem>>, vector<8x32xf32>
    %8 = arith.addf %6, %7 : vector<8x32xf32>
    %c0_7 = arith.constant 0 : index
    %c0_8 = arith.constant 0 : index
    %9 = vector.load %arg6[%c0_7, %c0_8] : memref<8x32xf32, #tpu.memory_space<vmem>>, vector<8x32xf32>
    tpu.vector_store %arg6[%c0_7, %c0_8], %8 {strides = array<i32>} : memref<8x32xf32, #tpu.memory_space<vmem>>, vector<8x32xf32>,
    return
  }
  func.func @transform_0(%arg0: i32, %arg1: i32) -> (i32, i32) {
    %c0_i32 = arith.constant 0 : i32
    %c0_i32_0 = arith.constant 0 : i32
    return %arg0, %c0_i32 : i32, i32
  }
  func.func @transform_1(%arg0: i32, %arg1: i32) -> (i32, i32) {
    %c0_i32 = arith.constant 0 : i32
    %c0_i32_0 = arith.constant 0 : i32
    return %c0_i32, %arg1 : i32, i32
  }
  func.func @transform_2(%arg0: i32, %arg1: i32) -> (i32, i32) {
    %c0_i32 = arith.constant 0 : i32
    %c0_i32_0 = arith.constant 0 : i32
    return %c0_i32, %arg1 : i32, i32
  }
  func.func @transform_3(%arg0: i32, %arg1: i32) -> (i32, i32) {
    %c0_i32 = arith.constant 0 : i32
    return %arg0, %arg1 : i32, i32
  }
  func.func @transform_4(%arg0: i32, %arg1: i32) -> (i32, i32) {
    %c0_i32 = arith.constant 0 : i32
    return %arg0, %arg1 : i32, i32
  }
}

</mosaic_0001>

<llo_original>
// kernel: tpu_custom_call.1
$region0: #{tpu_custom_call.1}
  #allocation0 [shape = 'u32[]', space=smem, size = 0x4, offset = 0x4, fixed_abs, tag = 'smem constant byte address 0x4 - core index']
  #allocation1 [shape = 'u32[144,128]{1,0:T(1,128)}', space=vmem, size = 0x12000, scoped, tag = 'internal scratch']
  %s0 = inlined_call_operand.vmem [shape: f32[16,32], index: 0, kind: input, shape index: {}]
  %s1 = inlined_call_operand.vmem [shape: bf16[32,32], index: 1, kind: input, shape index: {}]
  %s2 = inlined_call_operand.vmem [shape: f32[1,32], index: 2, kind: input, shape index: {}]
  %s3 = inlined_call_operand.hbm [shape: f32[16,32], index: 3, kind: input, shape index: {}, may-alias: {3,4}]
  %s4 = inlined_call_operand.hbm [shape: f32[16,32], index: 4, kind: output, shape index: {}, may-alias: {3,4}]
  %s5 = sld [smem:[#allocation0]]
  $region53: #{tpu_custom_call.1} parent=0
    _
  %s7 = ssub.s32 1, %s5
  %s8 = scalar_select 0, %s7, %s5
  $region1: #{tpu_custom_call.1} parent=0
    #allocation2 [shape = 'u8[8192]{0}', space=vmem, size = 0x2000, scoped, tag = 'input window, operand 3']
    #allocation3 [shape = 's32[2]{0}', space=sflag, size = 0x8, scoped, tag = 'scoped memory for tpu_custom_call.1']
    #allocation4 [shape = 's32[2]{0}', space=sflag, size = 0x8, scoped, tag = 'scoped memory for tpu_custom_call.1']
    #allocation5 [shape = 'u8[8192]{0}', space=vmem, size = 0x2000, scoped, tag = 'output window, operand 0']
    %9 = vsyncpa [#allocation3], 0
    %s10 = scalar_lea.sflag [#allocation3], 1
    %11 = vsyncpa %s10, 0
    %12 = vsyncpa [#allocation4], 0
    %s13 = scalar_lea.sflag [#allocation4], 1
    %14 = vsyncpa %s13, 0
    loop: start=0, step=1, limit=4
    $region2: #{tpu_custom_call.1} parent=1 // loop_pre_header
      _
    $region3: #{tpu_custom_call.1} parent=1 // loop_header
      %s16 = sphi 0, %s20
      %p17 = scmp.ge.s32.totalorder %s16, 4
      %s23 = sphi 0, %s35
      %s24 = sphi 0, %s31
      %s25 = sphi 0, %s23
      %s26 = sphi 0, %s24
      %s27 = sphi 0, %s25
      %s28 = sphi 0, %s26
      %s38 = sphi 0, %s40
      %s41 = sphi 0, %s38
      %s42 = sphi 0, %s41
      %s58 = sphi 0, %s42
      %s64 = sphi 0, %s66
      %s67 = sphi 0, %s64
      %s68 = sphi 0, %s67
      %s84 = sphi 0, %s68
      %s90 = sphi 0, %s92
      %s93 = sphi 0, %s90
      %s94 = sphi 0, %s93
      %s110 = sphi 0, %s94
      %s118 = sphi 0, %s120
      %s121 = sphi 0, %s118
      %s122 = sphi 0, %s121
      %s138 = sphi 0, %s122
      %s146 = sphi 0, %s148
      %s149 = sphi 0, %s146
      %s150 = sphi 0, %s149
      %s166 = sphi 0, %s150
    $region4: #{tpu_custom_call.1} parent=1 // loop_header_branch
      %19 = sbr.rel (%p17) target = $region8
    $region5: #{tpu_custom_call.1} parent=1 // loop_body
      %s21 = ssub.s32 %s16, 1
      %s22 = ssub.s32 %s16, 2
      %s29 = sadd.s32 1, %s24
      %p30 = scmp.ge.s32.totalorder %s29, 1
      %s31 = scalar_select %p30, 0, %s29
      %s32 = sadd.s32 1, %s23
      %s33 = scalar_select %p30, %s32, %s23
      %p34 = scmp.ge.s32.totalorder %s33, 2
      %s35 = scalar_select %p34, 0, %s33
      %s36 = ssub.s32 %s23, %s35
      %p37 = scmp.eq.s32.totalorder %s36, 0
      %s39 = sadd.s32 %s38, 1
      %s40 = scalar_select %p37, %s38, %s39
      %p43 = pneg %p37
      %p44 = scmp.eq.s32.totalorder %s16, 1
      %p45 = por %p43, %p44
      %p46 = scmp.ne.s32.totalorder %s38, %s41
      %p47 = scmp.eq.s32.totalorder %s16, 0
      %p48 = por %p46, %p47
      %p49 = scmp.ne.s32.totalorder %s38, %s41
      %p50 = scmp.eq.s32.totalorder %s21, 1
      %p51 = por %p49, %p50
      %p52 = scmp.ne.s32.totalorder %s41, %s42
      %p53 = scmp.eq.s32.totalorder %s21, 0
      %p54 = por %p52, %p53
      %p55 = scmp.ne.s32.totalorder %s41, %s42
      %p56 = scmp.eq.s32.totalorder %s22, 1
      %p57 = por %p55, %p56
      %p59 = scmp.ne.s32.totalorder %s42, %s58
      %p60 = scmp.eq.s32.totalorder %s22, 0
      %p61 = por %p59, %p60
      %s62 = ssub.s32 %s24, %s31
      %p63 = scmp.eq.s32.totalorder %s62, 0
      %s65 = sadd.s32 %s64, 1
      %s66 = scalar_select %p63, %s64, %s65
      %p69 = pneg %p63
      %p70 = scmp.eq.s32.totalorder %s16, 1
      %p71 = por %p69, %p70
      %p72 = scmp.ne.s32.totalorder %s64, %s67
      %p73 = scmp.eq.s32.totalorder %s16, 0
      %p74 = por %p72, %p73
      %p75 = scmp.ne.s32.totalorder %s64, %s67
      %p76 = scmp.eq.s32.totalorder %s21, 1
      %p77 = por %p75, %p76
      %p78 = scmp.ne.s32.totalorder %s67, %s68
      %p79 = scmp.eq.s32.totalorder %s21, 0
      %p80 = por %p78, %p79
      %p81 = scmp.ne.s32.totalorder %s67, %s68
      %p82 = scmp.eq.s32.totalorder %s22, 1
      %p83 = por %p81, %p82
      %p85 = scmp.ne.s32.totalorder %s68, %s84
      %p86 = scmp.eq.s32.totalorder %s22, 0
      %p87 = por %p85, %p86
      %s88 = ssub.s32 %s24, %s31
      %p89 = scmp.eq.s32.totalorder %s88, 0
      %s91 = sadd.s32 %s90, 1
      %s92 = scalar_select %p89, %s90, %s91
      %p95 = pneg %p89
      %p96 = scmp.eq.s32.totalorder %s16, 1
      %p97 = por %p95, %p96
      %p98 = scmp.ne.s32.totalorder %s90, %s93
      %p99 = scmp.eq.s32.totalorder %s16, 0
      %p100 = por %p98, %p99
      %p101 = scmp.ne.s32.totalorder %s90, %s93
      %p102 = scmp.eq.s32.totalorder %s21, 1
      %p103 = por %p101, %p102
      %p104 = scmp.ne.s32.totalorder %s93, %s94
      %p105 = scmp.eq.s32.totalorder %s21, 0
      %p106 = por %p104, %p105
      %p107 = scmp.ne.s32.totalorder %s93, %s94
      %p108 = scmp.eq.s32.totalorder %s22, 1
      %p109 = por %p107, %p108
      %p111 = scmp.ne.s32.totalorder %s94, %s110
      %p112 = scmp.eq.s32.totalorder %s22, 0
      %p113 = por %p111, %p112
      %s114 = ssub.s32 %s23, %s35
      %s115 = ssub.s32 %s24, %s31
      %s116 = sor.u32 %s114, %s115
      %p117 = scmp.eq.s32.totalorder %s116, 0
      %s119 = sadd.s32 %s118, 1
      %s120 = scalar_select %p117, %s118, %s119
      %p123 = pneg %p117
      %p124 = scmp.eq.s32.totalorder %s16, 1
      %p125 = por %p123, %p124
      %p126 = scmp.ne.s32.totalorder %s118, %s121
      %p127 = scmp.eq.s32.totalorder %s16, 0
      %p128 = por %p126, %p127
      %p129 = scmp.ne.s32.totalorder %s118, %s121
      %p130 = scmp.eq.s32.totalorder %s21, 1
      %p131 = por %p129, %p130
      %p132 = scmp.ne.s32.totalorder %s121, %s122
      %p133 = scmp.eq.s32.totalorder %s21, 0
      %p134 = por %p132, %p133
      %p135 = scmp.ne.s32.totalorder %s121, %s122
      %p136 = scmp.eq.s32.totalorder %s22, 1
      %p137 = por %p135, %p136
      %p139 = scmp.ne.s32.totalorder %s122, %s138
      %p140 = scmp.eq.s32.totalorder %s22, 0
      %p141 = por %p139, %p140
      %s142 = ssub.s32 %s23, %s35
      %s143 = ssub.s32 %s24, %s31
      %s144 = sor.u32 %s142, %s143
      %p145 = scmp.eq.s32.totalorder %s144, 0
      %s147 = sadd.s32 %s146, 1
      %s148 = scalar_select %p145, %s146, %s147
      %p151 = pneg %p145
      %p152 = scmp.eq.s32.totalorder %s16, 1
      %p153 = por %p151, %p152
      %p154 = scmp.ne.s32.totalorder %s146, %s149
      %p155 = scmp.eq.s32.totalorder %s16, 0
      %p156 = por %p154, %p155
      %p157 = scmp.ne.s32.totalorder %s146, %s149
      %p158 = scmp.eq.s32.totalorder %s21, 1
      %p159 = por %p157, %p158
      %p160 = scmp.ne.s32.totalorder %s149, %s150
      %p161 = scmp.eq.s32.totalorder %s21, 0
      %p162 = por %p160, %p161
      %p163 = scmp.ne.s32.totalorder %s149, %s150
      %p164 = scmp.eq.s32.totalorder %s22, 1
      %p165 = por %p163, %p164
      %p167 = scmp.ne.s32.totalorder %s150, %s166
      %p168 = scmp.eq.s32.totalorder %s22, 0
      %p169 = por %p167, %p168
      %p170 = scmp.le.s32.totalorder 1, %s16
      %p171 = scmp.lt.s32.totalorder %s16, 3
      %p172 = pnand %p170, %p171
      %p173 = pneg %p172
      // Predicated region
      $region9: #{tpu_custom_call.1} parent=5 // pred_check
        _
      $region10: #{tpu_custom_call.1} parent=5 // pred_check_branch
        %175 = sbr.rel (%p172) target = $region12
      $region11: #{tpu_custom_call.1} parent=5 // pred_region
        %s176 = ssub.s32 %s16, 1
        // Predicated region
        $region13: #{tpu_custom_call.1} parent=11 // pred_check
          %p177 = pneg %p80
        $region14: #{tpu_custom_call.1} parent=11 // pred_check_branch
          %179 = sbr.rel (%p177) target = $region16
        $region15: #{tpu_custom_call.1} parent=11 // pred_region
          %p180 = scmp.lt.s32.totalorder %s26, 0
          %s181 = scalar_select %p180, %s26, 0
          %s182 = smul.addr %s181, 4
          %s183 = scalar_lea.vmem %s1, %s182
        $region16: #{tpu_custom_call.1} parent=11 // pred_fallthru
          _
        // Predicated region
        $region17: #{tpu_custom_call.1} parent=11 // pred_check
          %p184 = pneg %p106
        $region18: #{tpu_custom_call.1} parent=11 // pred_check_branch
          %186 = sbr.rel (%p184) target = $region20
        $region19: #{tpu_custom_call.1} parent=11 // pred_region
          %p187 = scmp.lt.s32.totalorder %s26, 0
          %s188 = scalar_select %p187, %s26, 0
          %s189 = scalar_lea.vmem %s2, %s188
        $region20: #{tpu_custom_call.1} parent=11 // pred_fallthru
          _
      $region12: #{tpu_custom_call.1} parent=5 // pred_fallthru
        _
      %p190 = scmp.lt.s32.totalorder %s16, 2
      // Predicated region
      $region21: #{tpu_custom_call.1} parent=5 // pred_check
        %p191 = pneg %p190
      $region22: #{tpu_custom_call.1} parent=5 // pred_check_branch
        %193 = sbr.rel (%p191) target = $region24
      $region23: #{tpu_custom_call.1} parent=5 // pred_region
        // Predicated region
        $region25: #{tpu_custom_call.1} parent=23 // pred_check
          %p194 = pneg %p48
        $region26: #{tpu_custom_call.1} parent=23 // pred_check_branch
          %196 = sbr.rel (%p194) target = $region28
        $region27: #{tpu_custom_call.1} parent=23 // pred_region
          %p197 = scmp.lt.s32.totalorder %s23, 1
          %s198 = scalar_select %p197, %s23, 1
          %s199 = smul.addr %s198, 8
          %s200 = scalar_lea.vmem %s0, %s199
        $region28: #{tpu_custom_call.1} parent=23 // pred_fallthru
          _
        // Predicated region
        $region29: #{tpu_custom_call.1} parent=23 // pred_check
          %p201 = pneg %p128
        $region30: #{tpu_custom_call.1} parent=23 // pred_check_branch
          %203 = sbr.rel (%p201) target = $region32
        $region31: #{tpu_custom_call.1} parent=23 // pred_region
          %s204 = sand.u32 %s118, 1
          %s205 = scalar_lea.sflag [#allocation3], %s204
          %s206 = sand.u32 %s118, 1
          %s207 = smul.addr %s206, 8
          %s208 = scalar_lea.vmem [#allocation2], %s207
          %s210 = ssub.s32 128, 128
          %211 = vsyncadd %s205, %s210
          %s212 = sadd.s32 %s24, %s23
          %s213 = smul.addr %s212, 128
          %s214 = scalar_lea.hbm %s3, %s213
          %s216 = sshll.u32 %s208, 4
          %s217 = int_to_ptr.vmem [resolvable:$true] %s216
          %219 = dma.hbm_to_vmem [thread:$0]  %s214, 128, %s217, %s205
        $region32: #{tpu_custom_call.1} parent=23 // pred_fallthru
          _
      $region24: #{tpu_custom_call.1} parent=5 // pred_fallthru
        _
      %p220 = scmp.le.s32.totalorder 1, %s16
      %p221 = scmp.lt.s32.totalorder %s16, 3
      %p222 = pnand %p220, %p221
      %p223 = pneg %p222
      // Predicated region
      $region33: #{tpu_custom_call.1} parent=5 // pred_check
        _
      $region34: #{tpu_custom_call.1} parent=5 // pred_check_branch
        %225 = sbr.rel (%p222) target = $region36
      $region35: #{tpu_custom_call.1} parent=5 // pred_region
        %s226 = ssub.s32 %s16, 1
        %s227 = sand.u32 %s121, 1
        %s228 = scalar_lea.sflag [#allocation3], %s227
        %s229 = sand.u32 %s121, 1
        %s230 = smul.addr %s229, 8
        %s231 = scalar_lea.vmem [#allocation2], %s230
        // Predicated region
        $region37: #{tpu_custom_call.1} parent=35 // pred_check
          %p232 = pneg %p134
        $region38: #{tpu_custom_call.1} parent=35 // pred_check_branch
          %234 = sbr.rel (%p232) target = $region40
        $region39: #{tpu_custom_call.1} parent=35 // pred_region
          %235 = dma.done %s228, 128
        $region40: #{tpu_custom_call.1} parent=35 // pred_fallthru
          _
        %p236 = scmp.lt.s32.totalorder %s25, 1
        %s237 = scalar_select %p236, %s25, 1
        %s238 = smul.addr %s237, 8
        %s239 = scalar_lea.vmem %s0, %s238
        %p240 = pneg %p54
        %p241 = pneg %p51
        %p242 = scmp.lt.s32.totalorder %s26, 0
        %s243 = scalar_select %p242, %s26, 0
        %s244 = smul.addr %s243, 4
        %s245 = scalar_lea.vmem %s1, %s244
        %p246 = pneg %p80
        %p247 = pneg %p77
        %p248 = scmp.lt.s32.totalorder %s26, 0
        %s249 = scalar_select %p248, %s26, 0
        %s250 = scalar_lea.vmem %s2, %s249
        %p251 = pneg %p106
        %p252 = pneg %p103
        %s253 = sand.u32 %s121, 1
        %s254 = scalar_lea.sflag [#allocation3], %s253
        %s255 = sand.u32 %s121, 1
        %s256 = smul.addr %s255, 8
        %s257 = scalar_lea.vmem [#allocation2], %s256
        %p258 = pneg %p134
        %p259 = pneg %p131
        %p260 = pneg %p162
        %p261 = pneg %p159
        %s262 = sand.u32 %s149, 1
        %s263 = scalar_lea.sflag [#allocation4], %s262
        %s264 = sand.u32 %s149, 1
        %s265 = smul.addr %s264, 8
        %s266 = scalar_lea.vmem [#allocation5], %s265
        %p267 = scmp.lt.s32.totalorder %s25, 1
        %s268 = scalar_select %p267, %s25, 1
        %s269 = smul.addr %s268, 8
        %s270 = scalar_lea.vmem %s0, %s269
        %p271 = scmp.lt.s32.totalorder %s26, 0
        %s272 = scalar_select %p271, %s26, 0
        %s273 = smul.addr %s272, 4
        %s274 = scalar_lea.vmem %s1, %s273
        %p275 = scmp.lt.s32.totalorder %s26, 0
        %s276 = scalar_select %p275, %s26, 0
        %s277 = scalar_lea.vmem %s2, %s276
        %v279 = vld [vmem:[%s270] sm:$0xff]
        %v280 = vpack.c.bf16 %v279, %v279
        %v281 = vld [vmem:[%s274] sm:$0xf]
        %v282 = vld [vmem:[%s274 + $0x4] sm:$0xf]
        %v283 = vld [vmem:[%s274 + $0x8] sm:$0xf]
        %v284 = vld [vmem:[%s274 + $0xc] sm:$0xf]
        %v285 = vld [vmem:[%s277] sm:$0x1]
        %v287 = vlaneseq
        %v288 = vshrl.u32 %v287, 7
        %v289 = vsub.s32 0, %v288
        %v290 = vrot.slane %v285, %v289
        %v296 = vunpack.c.l.b16 %v281
        %v297 = vunpack.c.l.b16 %v282
        %v298 = vunpack.c.l.b16 %v283
        %v299 = vunpack.c.l.b16 %v284
        %v300 = vpack.c.b16 %v297, %v296
        %v301 = vpack.c.b16 %v299, %v298
        %vm304 = vcmask 261120
        %v306 = vsel %vm304, %v280, 0
        %308 = vmatprep.subr.bf16.mxu0 0
        %309 = vmatpush1.bf16.msra.mxu0 %v300
        %310 = vmatprep.subr.bf16.mxu0 0
        %311 = vmatpush1.bf16.msra.mxu0 %v301
        %312 = vmatprep.subr.bf16.mxu0 0
        %313 = vmatpush1.bf16.msra.mxu0 0
        %314 = vmatprep.subr.bf16.mxu0 0
        %315 = vmatpush1.bf16.msra.mxu0 0
        %316 = vmatprep.subr.bf16.mxu0 0
        %317 = vmatpush1.bf16.msra.mxu0 0
        %318 = vmatprep.subr.bf16.mxu0 0
        %319 = vmatpush1.bf16.msra.mxu0 0
        %320 = vmatprep.subr.bf16.mxu0 0
        %321 = vmatpush1.bf16.msra.mxu0 0
        %322 = vmatprep.subr.bf16.mxu0 0
        %323 = vmatpush1.bf16.msra.mxu0 0
        %324 = vmatprep.subr.bf16.mxu0 0
        %325 = vmatpush1.bf16.msra.mxu0 0
        %326 = vmatprep.subr.bf16.mxu0 0
        %327 = vmatpush1.bf16.msra.mxu0 0
        %328 = vmatprep.subr.bf16.mxu0 0
        %329 = vmatpush1.bf16.msra.mxu0 0
        %330 = vmatprep.subr.bf16.mxu0 0
        %331 = vmatpush1.bf16.msra.mxu0 0
        %332 = vmatprep.subr.bf16.mxu0 0
        %333 = vmatpush1.bf16.msra.mxu0 0
        %334 = vmatprep.subr.bf16.mxu0 0
        %335 = vmatpush1.bf16.msra.mxu0 0
        %336 = vmatprep.subr.bf16.mxu0 0
        %337 = vmatpush1.bf16.msra.mxu0 0
        %338 = vmatprep.subr.bf16.mxu0 0
        %339 = vmatpush1.bf16.msra.mxu0 0
        %340 = vmatprep.mubr.bf16.mxu0 0
        %341 = vmatmul.mubr.bf16.gmra.mrb[0].mxu0 %v306
        %v342 = vpop.f32.mrb[0].mxu0
        %v343 = vadd.f32 %v290, %v342
        %v344 = vpop.f32.mrb[0].mxu0
        %v345 = vpop.f32.mrb[0].mxu0
        %v346 = vpop.f32.mrb[0].mxu0
        %347 = vdwg.mxu0
        %v348 = vld [vmem:[%s231] sm:$0xff]
        %v349 = vadd.f32 %v343, %v348
        %350 = vst.msk [vmem:[%s266] sm:$0xff] %vm304, %v349
        %s351 = sand.u32 %s149, 1
        %s352 = scalar_lea.sflag [#allocation4], %s351
        %s353 = sand.u32 %s149, 1
        %s354 = smul.addr %s353, 8
        %s355 = scalar_lea.vmem [#allocation5], %s354
        // Predicated region
        $region41: #{tpu_custom_call.1} parent=35 // pred_check
          %p356 = pneg %p159
        $region42: #{tpu_custom_call.1} parent=35 // pred_check_branch
          %358 = sbr.rel (%p356) target = $region44
        $region43: #{tpu_custom_call.1} parent=35 // pred_region
          %s360 = ssub.s32 128, 128
          %361 = vsyncadd %s352, %s360
          %s362 = sadd.s32 %s26, %s25
          %s363 = smul.addr %s362, 128
          %s364 = scalar_lea.hbm %s4, %s363
          %s366 = sshll.u32 %s355, 4
          %s367 = int_to_ptr.vmem [resolvable:$true] %s366
          %369 = dma.vmem_to_hbm [thread:$0]  %s367, 128, %s364, %s352
        $region44: #{tpu_custom_call.1} parent=35 // pred_fallthru
          _
      $region36: #{tpu_custom_call.1} parent=5 // pred_fallthru
        _
      %p370 = scmp.le.s32.totalorder 2, %s16
      // Predicated region
      $region45: #{tpu_custom_call.1} parent=5 // pred_check
        %p371 = pneg %p370
      $region46: #{tpu_custom_call.1} parent=5 // pred_check_branch
        %373 = sbr.rel (%p371) target = $region48
      $region47: #{tpu_custom_call.1} parent=5 // pred_region
        %s374 = ssub.s32 %s16, 2
        // Predicated region
        $region49: #{tpu_custom_call.1} parent=47 // pred_check
          %p375 = pneg %p165
        $region50: #{tpu_custom_call.1} parent=47 // pred_check_branch
          %377 = sbr.rel (%p375) target = $region52
        $region51: #{tpu_custom_call.1} parent=47 // pred_region
          %s378 = sand.u32 %s150, 1
          %s379 = scalar_lea.sflag [#allocation4], %s378
          %s380 = sand.u32 %s150, 1
          %s381 = smul.addr %s380, 8
          %s382 = scalar_lea.vmem [#allocation5], %s381
          %383 = dma.done %s379, 128
        $region52: #{tpu_custom_call.1} parent=47 // pred_fallthru
          _
      $region48: #{tpu_custom_call.1} parent=5 // pred_fallthru
        _
    $region6: #{tpu_custom_call.1} parent=1 // loop_footer
      %s20 = sadd.s32 1, %s16
    $region7: #{tpu_custom_call.1} parent=1 // loop_footer_branch
      %15 = sbr.rel target = $region3
    $region8: #{tpu_custom_call.1} parent=1 // loop_exit
      _
    %384 = vsyncpa [#allocation3], 1
    %s385 = scalar_lea.sflag [#allocation3], 1
    %386 = vsyncpa %s385, 1
    %387 = vsyncpa [#allocation4], 1
    %s388 = scalar_lea.sflag [#allocation4], 1
    %389 = vsyncpa %s388, 1

</llo_original>
